<compile_context>
chip_gen: v7x
topology: tpu7x:2x2x1
jax: 0.10.0
libtpu: 0.0.40
codegen_flags: <defaults>
</compile_context>

<pallas_src>
import functools

import jax
import jax.numpy as jnp
from jax.experimental import pallas as pl
from jax.experimental.pallas import tpu as pltpu


_LANES = 1024          # lane-dense slab width: large multiple of 128
_MAX_BLOCK_ROWS = 512  # 512 x 1024 f32 = 2 MiB per input block
_NCORES = 2            # leading 'parallel' axis (2x on v7x, harmless on 1-TC chips)


def _round_up(a, b):
    return (a + b - 1) // b * b


def _vae_loss_kernel(x_ref, xr_ref, mu_ref, logvar_ref, out_ref, acc_ref,
                     *, block_rows):
    core = pl.program_id(0)
    step = pl.program_id(1)
    nsteps = pl.num_programs(1)

    @pl.when(step == 0)
    def _init():
        acc_ref[...] = jnp.zeros_like(acc_ref)

    # Stream native dtype (bf16 halves HBM traffic); upcast on the VPU and
    # accumulate in f32.
    x = x_ref[...].astype(jnp.float32)
    xr = xr_ref[...].astype(jnp.float32)
    d = xr - x
    sq = d * d                                          # (block_rows, _LANES)

    # Row-group partial reduce only: splitting the leading dim keeps the last
    # two dims (8, _LANES) tile-aligned, and the axis-0 sum is pure VPU adds.
    # The expensive cross-lane reduce is deferred to the final step.
    sq3 = sq.reshape(block_rows // 8, 8, _LANES)
    acc_ref[...] += jnp.sum(sq3, axis=0)

    @pl.when(step == nsteps - 1)
    def _finalize():
        total = jnp.sum(acc_ref[...])                   # one cross-lane reduce

        # KL term: -0.5 * sum(1 + logvar - mu^2 - exp(logvar)).
        # Tiny; evaluated once per core at the very end, kept only on core 0.
        mu = mu_ref[...].astype(jnp.float32)
        lv = logvar_ref[...].astype(jnp.float32)
        kl = -0.5 * jnp.sum(1.0 + lv - mu * mu - jnp.exp(lv))
        is_core0 = (core == 0).astype(jnp.float32)
        val = total + is_core0 * kl

        # Broadcast into the lane-dense per-core (8,128) block -> unmasked vst.
        out_ref[...] = jnp.broadcast_to(val, out_ref.shape).astype(jnp.float32)


def vae_loss(x, x_reconstruction, mu, logvar):
    """Pallas implementation of VAELoss.forward. Returns a scalar f32."""
    assert x.shape == x_reconstruction.shape

    n = x.size
    x_flat = x.reshape(-1)
    xr_flat = x_reconstruction.reshape(-1)

    # Lane-dense tiling: rows of width _LANES, row-tiles of block_rows rows,
    # split evenly across _NCORES partial sums.
    rows_needed = pl.cdiv(n, _LANES)
    block_rows = min(_MAX_BLOCK_ROWS, _round_up(rows_needed, 8))
    rows = _round_up(rows_needed, _NCORES * block_rows)
    pad = rows * _LANES - n
    if pad:
        # Zero padding contributes 0 to the squared-error sum.
        x_flat = jnp.pad(x_flat, (0, pad))
        xr_flat = jnp.pad(xr_flat, (0, pad))
    x2 = x_flat.reshape(rows, _LANES)
    xr2 = xr_flat.reshape(rows, _LANES)

    steps_per_core = rows // (_NCORES * block_rows)

    def img_map(c, i):
        return (c * steps_per_core + i, 0)

    kernel = functools.partial(_vae_loss_kernel, block_rows=block_rows)

    out = pl.pallas_call(
        kernel,
        out_shape=jax.ShapeDtypeStruct((_NCORES * 8, 128), jnp.float32),
        grid_spec=pltpu.PrefetchScalarGridSpec(
            num_scalar_prefetch=0,
            grid=(_NCORES, steps_per_core),
            in_specs=[
                pl.BlockSpec((block_rows, _LANES), img_map),
                pl.BlockSpec((block_rows, _LANES), img_map),
                # mu / logvar: whole small blocks; block index never changes,
                # so they are DMA'd once and stay resident.
                pl.BlockSpec(mu.shape, lambda c, i: (0, 0)),
                pl.BlockSpec(logvar.shape, lambda c, i: (0, 0)),
            ],
            out_specs=pl.BlockSpec((8, 128), lambda c, i: (c, 0)),
            scratch_shapes=[pltpu.VMEM((8, _LANES), jnp.float32)],
        ),
        compiler_params=pltpu.CompilerParams(
            dimension_semantics=("parallel", "arbitrary"),
            vmem_limit_bytes=32 * 1024 * 1024,
        ),
    )(x2, xr2, mu, logvar)

    # One partial per core (KL already folded into core 0's partial).
    return jnp.sum(out[::8, 0])


def _reference_vae_loss(x, x_reconstruction, mu, logvar):
    recon = jnp.sum((x_reconstruction.astype(jnp.float32)
                     - x.astype(jnp.float32)) ** 2)
    kl = -0.5 * jnp.sum(1.0 + logvar - mu**2 - jnp.exp(logvar))
    return recon + kl


if __name__ == "__main__":
    key = jax.random.PRNGKey(0)
    k1, k2, k3, k4 = jax.random.split(key, 4)

    # Small shapes consistent with a VAE forward pass:
    # images (B, C, H, W), latents (B, Z)
    B, C, H, W, Z = 2, 4, 16, 16, 32
    x = jax.random.normal(k1, (B, C, H, W), dtype=jnp.float32)
    x_recon = jax.random.normal(k2, (B, C, H, W), dtype=jnp.float32)
    mu = jax.random.normal(k3, (B, Z), dtype=jnp.float32)
    logvar = 0.1 * jax.random.normal(k4, (B, Z), dtype=jnp.float32)

    loss = jax.block_until_ready(vae_loss(x, x_recon, mu, logvar))
    ref = jax.block_until_ready(_reference_vae_loss(x, x_recon, mu, logvar))

    assert jnp.allclose(loss, ref, rtol=1e-5, atol=1e-4), (loss, ref)
    print("KERNEL_OK")
</pallas_src>

<mosaic_0001>
module attributes {stable_mosaic.version = 11 : i64} {
  func.func @_vae_loss_kernel(%arg0: i32, %arg1: i32, %arg2: memref<8x1024xf32, #tpu.memory_space<vmem>>, %arg3: memref<8x1024xf32, #tpu.memory_space<vmem>>, %arg4: memref<2x32xf32, #tpu.memory_space<vmem>>, %arg5: memref<2x32xf32, #tpu.memory_space<vmem>>, %arg6: memref<8x128xf32, #tpu.memory_space<vmem>>, %arg7: memref<8x1024xf32, #tpu.memory_space<vmem>>) attributes {dimension_semantics = [#tpu.dimension_semantics<parallel>, #tpu.dimension_semantics<arbitrary>], iteration_bounds = array<i64: 2, 1>, scalar_prefetch = 0 : i64, scratch_operands = 1 : i64, tpu.core_type = #tpu.core_type<tc>, window_params = [{transform_indices = @transform_0, window_bounds = array<i64: 8, 1024>}, {transform_indices = @transform_1, window_bounds = array<i64: 8, 1024>}, {pipeline_mode = #tpu.pipeline_mode<synchronous>, transform_indices = @transform_2, window_bounds = array<i64: 2, 32>}, {pipeline_mode = #tpu.pipeline_mode<synchronous>, transform_indices = @transform_3, window_bounds = array<i64: 2, 32>}, {transform_indices = @transform_4, window_bounds = array<i64: 8, 128>}]} {
    %c0_i32 = arith.constant 0 : i32
    %0 = arith.cmpi eq, %arg1, %c0_i32 : i32
    %1 = arith.extui %0 : i1 to i32
    %c0_i32_0 = arith.constant 0 : i32
    %2 = arith.cmpi ne, %1, %c0_i32_0 : i32
    scf.if %2 {
      %cst_10 = arith.constant 0.000000e+00 : f32
      %15 = vector.broadcast %cst_10 : f32 to vector<8x1024xf32>
      %c0_11 = arith.constant 0 : index
      %c0_12 = arith.constant 0 : index
      %16 = vector.load %arg7[%c0_11, %c0_12] : memref<8x1024xf32, #tpu.memory_space<vmem>>, vector<8x1024xf32>
      tpu.vector_store %arg7[%c0_11, %c0_12], %15 {strides = array<i32>} : memref<8x1024xf32, #tpu.memory_space<vmem>>, vector<8x1024xf32>,
    } else {
    }
    %c0 = arith.constant 0 : index
    %c0_1 = arith.constant 0 : index
    %3 = vector.load %arg2[%c0, %c0_1] : memref<8x1024xf32, #tpu.memory_space<vmem>>, vector<8x1024xf32>
    %c0_2 = arith.constant 0 : index
    %c0_3 = arith.constant 0 : index
    %4 = vector.load %arg3[%c0_2, %c0_3] : memref<8x1024xf32, #tpu.memory_space<vmem>>, vector<8x1024xf32>
    %5 = arith.subf %4, %3 : vector<8x1024xf32>
    %6 = arith.mulf %5, %5 : vector<8x1024xf32>
    %7 = vector.shape_cast %6 : vector<8x1024xf32> to vector<1x8x1024xf32>
    %c0_4 = arith.constant 0 : index
    %c0_5 = arith.constant 0 : index
    %8 = vector.load %arg7[%c0_4, %c0_5] : memref<8x1024xf32, #tpu.memory_space<vmem>>, vector<8x1024xf32>
    %cst = arith.constant dense<0.000000e+00> : vector<8x1024xf32>
    %9 = vector.multi_reduction <add>, %7, %cst [0] : vector<1x8x1024xf32> to vector<8x1024xf32>
    %10 = arith.addf %8, %9 : vector<8x1024xf32>
    %c0_6 = arith.constant 0 : index
    %c0_7 = arith.constant 0 : index
    %11 = vector.load %arg7[%c0_6, %c0_7] : memref<8x1024xf32, #tpu.memory_space<vmem>>, vector<8x1024xf32>
    tpu.vector_store %arg7[%c0_6, %c0_7], %10 {strides = array<i32>} : memref<8x1024xf32, #tpu.memory_space<vmem>>, vector<8x1024xf32>,
    %c0_i32_8 = arith.constant 0 : i32
    %12 = arith.cmpi eq, %arg1, %c0_i32_8 : i32
    %13 = arith.extui %12 : i1 to i32
    %c0_i32_9 = arith.constant 0 : i32
    %14 = arith.cmpi ne, %13, %c0_i32_9 : i32
    scf.if %14 {
      %c0_10 = arith.constant 0 : index
      %c0_11 = arith.constant 0 : index
      %15 = vector.load %arg7[%c0_10, %c0_11] : memref<8x1024xf32, #tpu.memory_space<vmem>>, vector<8x1024xf32>
      %16 = vector.shape_cast %15 : vector<8x1024xf32> to vector<1x8x1024xf32>
      %cst_12 = arith.constant dense<0.000000e+00> : vector<1xf32>
      %17 = vector.multi_reduction <add>, %16, %cst_12 [1, 2] : vector<1x8x1024xf32> to vector<1xf32>
      %18 = vector.shape_cast %17 : vector<1xf32> to vector<1x1x1xf32>
      %19 = vector.extract %18[0, 0, 0] : f32 from vector<1x1x1xf32>
      %c0_13 = arith.constant 0 : index
      %c0_14 = arith.constant 0 : index
      %20 = vector.load %arg4[%c0_13, %c0_14] : memref<2x32xf32, #tpu.memory_space<vmem>>, vector<2x32xf32>
      %c0_15 = arith.constant 0 : index
      %c0_16 = arith.constant 0 : index
      %21 = vector.load %arg5[%c0_15, %c0_16] : memref<2x32xf32, #tpu.memory_space<vmem>>, vector<2x32xf32>
      %cst_17 = arith.constant 1.000000e+00 : f32
      %22 = vector.broadcast %cst_17 : f32 to vector<2x32xf32>
      %23 = arith.addf %22, %21 : vector<2x32xf32>
      %24 = arith.mulf %20, %20 : vector<2x32xf32>
      %25 = arith.subf %23, %24 : vector<2x32xf32>
      %26 = math.exp %21 : vector<2x32xf32>
      %27 = arith.subf %25, %26 : vector<2x32xf32>
      %28 = vector.shape_cast %27 : vector<2x32xf32> to vector<1x2x32xf32>
      %cst_18 = arith.constant dense<0.000000e+00> : vector<1xf32>
      %29 = vector.multi_reduction <add>, %28, %cst_18 [1, 2] : vector<1x2x32xf32> to vector<1xf32>
      %30 = vector.shape_cast %29 : vector<1xf32> to vector<1x1x1xf32>
      %31 = vector.extract %30[0, 0, 0] : f32 from vector<1x1x1xf32>
      %cst_19 = arith.constant -5.000000e-01 : f32
      %32 = arith.mulf %cst_19, %31 : f32
      %c0_i32_20 = arith.constant 0 : i32
      %33 = arith.cmpi eq, %arg0, %c0_i32_20 : i32
      %34 = arith.extui %33 : i1 to i32
      %35 = arith.sitofp %34 : i32 to f32
      %36 = arith.mulf %35, %32 : f32
      %37 = arith.addf %19, %36 : f32
      %38 = vector.broadcast %37 : f32 to vector<8x128xf32>
      %c0_21 = arith.constant 0 : index
      %c0_22 = arith.constant 0 : index
      %39 = vector.load %arg6[%c0_21, %c0_22] : memref<8x128xf32, #tpu.memory_space<vmem>>, vector<8x128xf32>
      tpu.vector_store %arg6[%c0_21, %c0_22], %38 {strides = array<i32>} : memref<8x128xf32, #tpu.memory_space<vmem>>, vector<8x128xf32>,
    } else {
    }
    return
  }
  func.func @transform_0(%arg0: i32, %arg1: i32) -> (i32, i32) {
    %c1_i32 = arith.constant 1 : i32
    %0 = arith.muli %arg0, %c1_i32 : i32
    %1 = arith.addi %0, %arg1 : i32
    %c0_i32 = arith.constant 0 : i32
    %c0_i32_0 = arith.constant 0 : i32
    return %1, %c0_i32 : i32, i32
  }
  func.func @transform_1(%arg0: i32, %arg1: i32) -> (i32, i32) {
    %c1_i32 = arith.constant 1 : i32
    %0 = arith.muli %arg0, %c1_i32 : i32
    %1 = arith.addi %0, %arg1 : i32
    %c0_i32 = arith.constant 0 : i32
    %c0_i32_0 = arith.constant 0 : i32
    return %1, %c0_i32 : i32, i32
  }
  func.func @transform_2(%arg0: i32, %arg1: i32) -> (i32, i32) {
    %c0_i32 = arith.constant 0 : i32
    %c0_i32_0 = arith.constant 0 : i32
    %c0_i32_1 = arith.constant 0 : i32
    return %c0_i32, %c0_i32_0 : i32, i32
  }
  func.func @transform_3(%arg0: i32, %arg1: i32) -> (i32, i32) {
    %c0_i32 = arith.constant 0 : i32
    %c0_i32_0 = arith.constant 0 : i32
    %c0_i32_1 = arith.constant 0 : i32
    return %c0_i32, %c0_i32_0 : i32, i32
  }
  func.func @transform_4(%arg0: i32, %arg1: i32) -> (i32, i32) {
    %c0_i32 = arith.constant 0 : i32
    %c0_i32_0 = arith.constant 0 : i32
    return %arg0, %c0_i32 : i32, i32
  }
}

</mosaic_0001>

<llo_original>
// kernel: tpu_custom_call.1
$region0: #{tpu_custom_call.1}
  #allocation0 [shape = 'u32[]', space=smem, size = 0x4, offset = 0x4, fixed_abs, tag = 'smem constant byte address 0x4 - core index']
  #allocation1 [shape = 'u32[144,128]{1,0:T(1,128)}', space=vmem, size = 0x12000, scoped, tag = 'internal scratch']
  #allocation2 [shape = 'f32[8,1024]{1,0:T(8,128)}', space=vmem, size = 0x8000, scoped, tag = 'scratch operand']
  %s0 = inlined_call_operand.hbm [shape: f32[16,1024], index: 0, kind: input, shape index: {}]
  %s1 = inlined_call_operand.hbm [shape: f32[16,1024], index: 1, kind: input, shape index: {}]
  %s2 = inlined_call_operand.vmem [shape: f32[2,32], index: 2, kind: input, shape index: {}]
  %s3 = inlined_call_operand.vmem [shape: f32[2,32], index: 3, kind: input, shape index: {}]
  %s4 = inlined_call_operand.hbm [shape: f32[16,128], index: 4, kind: output, shape index: {}]
  %s5 = sld [smem:[#allocation0]]
  $region65: #{tpu_custom_call.1} parent=0
    _
  %s7 = ssub.s32 1, %s5
  %s8 = scalar_select 0, %s7, %s5
  $region1: #{tpu_custom_call.1} parent=0
    #allocation3 [shape = 'u8[65536]{0}', space=vmem, size = 0x10000, scoped, tag = 'input window, operand 0']
    #allocation4 [shape = 's32[2]{0}', space=sflag, size = 0x8, scoped, tag = 'scoped memory for tpu_custom_call.1']
    #allocation5 [shape = 's32[2]{0}', space=sflag, size = 0x8, scoped, tag = 'scoped memory for tpu_custom_call.1']
    #allocation6 [shape = 'u8[65536]{0}', space=vmem, size = 0x10000, scoped, tag = 'input window, operand 1']
    #allocation7 [shape = 's32[2]{0}', space=sflag, size = 0x8, scoped, tag = 'scoped memory for tpu_custom_call.1']
    #allocation8 [shape = 'u8[8192]{0}', space=vmem, size = 0x2000, scoped, tag = 'output window, operand 0']
    %9 = vsyncpa [#allocation4], 0
    %s10 = scalar_lea.sflag [#allocation4], 1
    %11 = vsyncpa %s10, 0
    %12 = vsyncpa [#allocation7], 0
    %s13 = scalar_lea.sflag [#allocation7], 1
    %14 = vsyncpa %s13, 0
    %15 = vsyncpa [#allocation5], 0
    %s16 = scalar_lea.sflag [#allocation5], 1
    %17 = vsyncpa %s16, 0
    loop: start=0, step=1, limit=4
    $region2: #{tpu_custom_call.1} parent=1 // loop_pre_header
      _
    $region3: #{tpu_custom_call.1} parent=1 // loop_header
      %s19 = sphi 0, %s23
      %p20 = scmp.ge.s32.totalorder %s19, 4
      %s26 = sphi 0, %s38
      %s27 = sphi 0, %s34
      %s28 = sphi 0, %s26
      %s29 = sphi 0, %s27
      %s30 = sphi 0, %s28
      %s31 = sphi 0, %s29
      %s43 = sphi 0, %s45
      %s46 = sphi 0, %s43
      %s47 = sphi 0, %s46
      %s63 = sphi 0, %s47
      %s71 = sphi 0, %s73
      %s74 = sphi 0, %s71
      %s75 = sphi 0, %s74
      %s91 = sphi 0, %s75
      %s95 = sphi 0, %s95
      %s97 = sphi 0, %s95
      %s98 = sphi 0, %s97
      %s112 = sphi 0, %s98
      %s116 = sphi 0, %s116
      %s118 = sphi 0, %s116
      %s119 = sphi 0, %s118
      %s133 = sphi 0, %s119
      %s139 = sphi 0, %s141
      %s142 = sphi 0, %s139
      %s143 = sphi 0, %s142
      %s159 = sphi 0, %s143
    $region4: #{tpu_custom_call.1} parent=1 // loop_header_branch
      %22 = sbr.rel (%p20) target = $region8
    $region5: #{tpu_custom_call.1} parent=1 // loop_body
      %s24 = ssub.s32 %s19, 1
      %s25 = ssub.s32 %s19, 2
      %s32 = sadd.s32 1, %s27
      %p33 = scmp.ge.s32.totalorder %s32, 1
      %s34 = scalar_select %p33, 0, %s32
      %s35 = sadd.s32 1, %s26
      %s36 = scalar_select %p33, %s35, %s26
      %p37 = scmp.ge.s32.totalorder %s36, 2
      %s38 = scalar_select %p37, 0, %s36
      %s39 = sadd.s32 %s26, %s27
      %s40 = sadd.s32 %s38, %s34
      %s41 = ssub.s32 %s39, %s40
      %p42 = scmp.eq.s32.totalorder %s41, 0
      %s44 = sadd.s32 %s43, 1
      %s45 = scalar_select %p42, %s43, %s44
      %p48 = pneg %p42
      %p49 = scmp.eq.s32.totalorder %s19, 1
      %p50 = por %p48, %p49
      %p51 = scmp.ne.s32.totalorder %s43, %s46
      %p52 = scmp.eq.s32.totalorder %s19, 0
      %p53 = por %p51, %p52
      %p54 = scmp.ne.s32.totalorder %s43, %s46
      %p55 = scmp.eq.s32.totalorder %s24, 1
      %p56 = por %p54, %p55
      %p57 = scmp.ne.s32.totalorder %s46, %s47
      %p58 = scmp.eq.s32.totalorder %s24, 0
      %p59 = por %p57, %p58
      %p60 = scmp.ne.s32.totalorder %s46, %s47
      %p61 = scmp.eq.s32.totalorder %s25, 1
      %p62 = por %p60, %p61
      %p64 = scmp.ne.s32.totalorder %s47, %s63
      %p65 = scmp.eq.s32.totalorder %s25, 0
      %p66 = por %p64, %p65
      %s67 = sadd.s32 %s26, %s27
      %s68 = sadd.s32 %s38, %s34
      %s69 = ssub.s32 %s67, %s68
      %p70 = scmp.eq.s32.totalorder %s69, 0
      %s72 = sadd.s32 %s71, 1
      %s73 = scalar_select %p70, %s71, %s72
      %p76 = pneg %p70
      %p77 = scmp.eq.s32.totalorder %s19, 1
      %p78 = por %p76, %p77
      %p79 = scmp.ne.s32.totalorder %s71, %s74
      %p80 = scmp.eq.s32.totalorder %s19, 0
      %p81 = por %p79, %p80
      %p82 = scmp.ne.s32.totalorder %s71, %s74
      %p83 = scmp.eq.s32.totalorder %s24, 1
      %p84 = por %p82, %p83
      %p85 = scmp.ne.s32.totalorder %s74, %s75
      %p86 = scmp.eq.s32.totalorder %s24, 0
      %p87 = por %p85, %p86
      %p88 = scmp.ne.s32.totalorder %s74, %s75
      %p89 = scmp.eq.s32.totalorder %s25, 1
      %p90 = por %p88, %p89
      %p92 = scmp.ne.s32.totalorder %s75, %s91
      %p93 = scmp.eq.s32.totalorder %s25, 0
      %p94 = por %p92, %p93
      %s96 = sadd.s32 %s95, 1
      %p99 = scmp.eq.s32.totalorder %s19, 1
      %p100 = scmp.ne.s32.totalorder %s95, %s97
      %p101 = scmp.eq.s32.totalorder %s19, 0
      %p102 = por %p100, %p101
      %p103 = scmp.ne.s32.totalorder %s95, %s97
      %p104 = scmp.eq.s32.totalorder %s24, 1
      %p105 = por %p103, %p104
      %p106 = scmp.ne.s32.totalorder %s97, %s98
      %p107 = scmp.eq.s32.totalorder %s24, 0
      %p108 = por %p106, %p107
      %p109 = scmp.ne.s32.totalorder %s97, %s98
      %p110 = scmp.eq.s32.totalorder %s25, 1
      %p111 = por %p109, %p110
      %p113 = scmp.ne.s32.totalorder %s98, %s112
      %p114 = scmp.eq.s32.totalorder %s25, 0
      %p115 = por %p113, %p114
      %s117 = sadd.s32 %s116, 1
      %p120 = scmp.eq.s32.totalorder %s19, 1
      %p121 = scmp.ne.s32.totalorder %s116, %s118
      %p122 = scmp.eq.s32.totalorder %s19, 0
      %p123 = por %p121, %p122
      %p124 = scmp.ne.s32.totalorder %s116, %s118
      %p125 = scmp.eq.s32.totalorder %s24, 1
      %p126 = por %p124, %p125
      %p127 = scmp.ne.s32.totalorder %s118, %s119
      %p128 = scmp.eq.s32.totalorder %s24, 0
      %p129 = por %p127, %p128
      %p130 = scmp.ne.s32.totalorder %s118, %s119
      %p131 = scmp.eq.s32.totalorder %s25, 1
      %p132 = por %p130, %p131
      %p134 = scmp.ne.s32.totalorder %s119, %s133
      %p135 = scmp.eq.s32.totalorder %s25, 0
      %p136 = por %p134, %p135
      %s137 = ssub.s32 %s26, %s38
      %p138 = scmp.eq.s32.totalorder %s137, 0
      %s140 = sadd.s32 %s139, 1
      %s141 = scalar_select %p138, %s139, %s140
      %p144 = pneg %p138
      %p145 = scmp.eq.s32.totalorder %s19, 1
      %p146 = por %p144, %p145
      %p147 = scmp.ne.s32.totalorder %s139, %s142
      %p148 = scmp.eq.s32.totalorder %s19, 0
      %p149 = por %p147, %p148
      %p150 = scmp.ne.s32.totalorder %s139, %s142
      %p151 = scmp.eq.s32.totalorder %s24, 1
      %p152 = por %p150, %p151
      %p153 = scmp.ne.s32.totalorder %s142, %s143
      %p154 = scmp.eq.s32.totalorder %s24, 0
      %p155 = por %p153, %p154
      %p156 = scmp.ne.s32.totalorder %s142, %s143
      %p157 = scmp.eq.s32.totalorder %s25, 1
      %p158 = por %p156, %p157
      %p160 = scmp.ne.s32.totalorder %s143, %s159
      %p161 = scmp.eq.s32.totalorder %s25, 0
      %p162 = por %p160, %p161
      %p163 = scmp.le.s32.totalorder 1, %s19
      %p164 = scmp.lt.s32.totalorder %s19, 3
      %p165 = pnand %p163, %p164
      %p166 = pneg %p165
      // Predicated region
      $region9: #{tpu_custom_call.1} parent=5 // pred_check
        _
      $region10: #{tpu_custom_call.1} parent=5 // pred_check_branch
        %168 = sbr.rel (%p165) target = $region12
      $region11: #{tpu_custom_call.1} parent=5 // pred_region
        %s169 = ssub.s32 %s19, 1
        // Predicated region
        $region13: #{tpu_custom_call.1} parent=11 // pred_check
          %p170 = pneg %p108
        $region14: #{tpu_custom_call.1} parent=11 // pred_check_branch
          %172 = sbr.rel (%p170) target = $region16
        $region15: #{tpu_custom_call.1} parent=11 // pred_region
          _
        $region16: #{tpu_custom_call.1} parent=11 // pred_fallthru
          _
        // Predicated region
        $region17: #{tpu_custom_call.1} parent=11 // pred_check
          %p173 = pneg %p129
        $region18: #{tpu_custom_call.1} parent=11 // pred_check_branch
          %175 = sbr.rel (%p173) target = $region20
        $region19: #{tpu_custom_call.1} parent=11 // pred_region
          _
        $region20: #{tpu_custom_call.1} parent=11 // pred_fallthru
          _
      $region12: #{tpu_custom_call.1} parent=5 // pred_fallthru
        _
      %p176 = scmp.lt.s32.totalorder %s19, 2
      // Predicated region
      $region21: #{tpu_custom_call.1} parent=5 // pred_check
        %p177 = pneg %p176
      $region22: #{tpu_custom_call.1} parent=5 // pred_check_branch
        %179 = sbr.rel (%p177) target = $region24
      $region23: #{tpu_custom_call.1} parent=5 // pred_region
        // Predicated region
        $region25: #{tpu_custom_call.1} parent=23 // pred_check
          %p180 = pneg %p53
        $region26: #{tpu_custom_call.1} parent=23 // pred_check_branch
          %182 = sbr.rel (%p180) target = $region28
        $region27: #{tpu_custom_call.1} parent=23 // pred_region
          %s183 = sand.u32 %s43, 1
          %s184 = scalar_lea.sflag [#allocation4], %s183
          %s185 = sand.u32 %s43, 1
          %s186 = smul.addr %s185, 64
          %s187 = scalar_lea.vmem [#allocation3], %s186
          %s188 = sadd.s32 %s26, %s27
          %s190 = ssub.s32 1024, 1024
          %191 = vsyncadd %s184, %s190
          %s192 = smul.addr %s188, 8
          %s193 = smul.addr %s192, 128
          %s194 = scalar_lea.hbm %s0, %s193
          %s196 = sshll.u32 %s187, 4
          %s197 = int_to_ptr.vmem [resolvable:$true] %s196
          %199 = dma.hbm_to_vmem [thread:$0]  %s194, 1024, %s197, %s184
        $region28: #{tpu_custom_call.1} parent=23 // pred_fallthru
          _
        // Predicated region
        $region29: #{tpu_custom_call.1} parent=23 // pred_check
          %p200 = pneg %p81
        $region30: #{tpu_custom_call.1} parent=23 // pred_check_branch
          %202 = sbr.rel (%p200) target = $region32
        $region31: #{tpu_custom_call.1} parent=23 // pred_region
          %s203 = sand.u32 %s71, 1
          %s204 = scalar_lea.sflag [#allocation7], %s203
          %s205 = sand.u32 %s71, 1
          %s206 = smul.addr %s205, 64
          %s207 = scalar_lea.vmem [#allocation6], %s206
          %s208 = sadd.s32 %s26, %s27
          %s210 = ssub.s32 1024, 1024
          %211 = vsyncadd %s204, %s210
          %s212 = smul.addr %s208, 8
          %s213 = smul.addr %s212, 128
          %s214 = scalar_lea.hbm %s1, %s213
          %s216 = sshll.u32 %s207, 4
          %s217 = int_to_ptr.vmem [resolvable:$true] %s216
          %219 = dma.hbm_to_vmem [thread:$0]  %s214, 1024, %s217, %s204
        $region32: #{tpu_custom_call.1} parent=23 // pred_fallthru
          _
      $region24: #{tpu_custom_call.1} parent=5 // pred_fallthru
        _
      %p220 = scmp.le.s32.totalorder 1, %s19
      %p221 = scmp.lt.s32.totalorder %s19, 3
      %p222 = pnand %p220, %p221
      %p223 = pneg %p222
      // Predicated region
      $region33: #{tpu_custom_call.1} parent=5 // pred_check
        _
      $region34: #{tpu_custom_call.1} parent=5 // pred_check_branch
        %225 = sbr.rel (%p222) target = $region36
      $region35: #{tpu_custom_call.1} parent=5 // pred_region
        %s226 = ssub.s32 %s19, 1
        %s227 = sand.u32 %s46, 1
        %s228 = scalar_lea.sflag [#allocation4], %s227
        %s229 = sand.u32 %s46, 1
        %s230 = smul.addr %s229, 64
        %s231 = scalar_lea.vmem [#allocation3], %s230
        // Predicated region
        $region37: #{tpu_custom_call.1} parent=35 // pred_check
          %p232 = pneg %p59
        $region38: #{tpu_custom_call.1} parent=35 // pred_check_branch
          %234 = sbr.rel (%p232) target = $region40
        $region39: #{tpu_custom_call.1} parent=35 // pred_region
          %235 = dma.done %s228, 1024
        $region40: #{tpu_custom_call.1} parent=35 // pred_fallthru
          _
        %s236 = sand.u32 %s74, 1
        %s237 = scalar_lea.sflag [#allocation7], %s236
        %s238 = sand.u32 %s74, 1
        %s239 = smul.addr %s238, 64
        %s240 = scalar_lea.vmem [#allocation6], %s239
        // Predicated region
        $region41: #{tpu_custom_call.1} parent=35 // pred_check
          %p241 = pneg %p87
        $region42: #{tpu_custom_call.1} parent=35 // pred_check_branch
          %243 = sbr.rel (%p241) target = $region44
        $region43: #{tpu_custom_call.1} parent=35 // pred_region
          %244 = dma.done %s237, 1024
        $region44: #{tpu_custom_call.1} parent=35 // pred_fallthru
          _
        %s245 = sand.u32 %s46, 1
        %s246 = scalar_lea.sflag [#allocation4], %s245
        %s247 = sand.u32 %s46, 1
        %s248 = smul.addr %s247, 64
        %s249 = scalar_lea.vmem [#allocation3], %s248
        %p250 = pneg %p59
        %p251 = pneg %p56
        %s252 = sand.u32 %s74, 1
        %s253 = scalar_lea.sflag [#allocation7], %s252
        %s254 = sand.u32 %s74, 1
        %s255 = smul.addr %s254, 64
        %s256 = scalar_lea.vmem [#allocation6], %s255
        %p257 = pneg %p87
        %p258 = pneg %p84
        %p259 = pneg %p108
        %p260 = pneg %p105
        %p261 = pneg %p129
        %p262 = pneg %p126
        %p263 = pneg %p155
        %p264 = pneg %p152
        %s265 = sand.u32 %s142, 1
        %s266 = scalar_lea.sflag [#allocation5], %s265
        %s267 = sand.u32 %s142, 1
        %s268 = smul.addr %s267, 8
        %s269 = scalar_lea.vmem [#allocation8], %s268
        %s270 = sadd.s32 %s28, %s29
        %s271 = sadd.s32 %s28, %s29
        %p272 = scmp.eq.s32.totalorder %s29, 0
        // Predicated region
        $region45: #{tpu_custom_call.1} parent=35 // pred_check
          %p273 = pneg %p272
        $region46: #{tpu_custom_call.1} parent=35 // pred_check_branch
          %275 = sbr.rel (%p273) target = $region48
        $region47: #{tpu_custom_call.1} parent=35 // pred_region
          %276 = vst [vmem:[#allocation2] sm:$0xff] 0.0
          %277 = vst [vmem:[#allocation2 + $0x8] sm:$0xff] 0.0
          %278 = vst [vmem:[#allocation2 + $0x10] sm:$0xff] 0.0
          %279 = vst [vmem:[#allocation2 + $0x18] sm:$0xff] 0.0
          %280 = vst [vmem:[#allocation2 + $0x20] sm:$0xff] 0.0
          %281 = vst [vmem:[#allocation2 + $0x28] sm:$0xff] 0.0
          %282 = vst [vmem:[#allocation2 + $0x30] sm:$0xff] 0.0
          %283 = vst [vmem:[#allocation2 + $0x38] sm:$0xff] 0.0
        $region48: #{tpu_custom_call.1} parent=35 // pred_fallthru
          _
        %v284 = vld [vmem:[%s231] sm:$0xff]
        %v285 = vld [vmem:[%s231 + $0x8] sm:$0xff]
        %v286 = vld [vmem:[%s231 + $0x10] sm:$0xff]
        %v287 = vld [vmem:[%s231 + $0x18] sm:$0xff]
        %v288 = vld [vmem:[%s231 + $0x20] sm:$0xff]
        %v289 = vld [vmem:[%s231 + $0x28] sm:$0xff]
        %v290 = vld [vmem:[%s231 + $0x30] sm:$0xff]
        %v291 = vld [vmem:[%s231 + $0x38] sm:$0xff]
        %v292 = vld [vmem:[%s240] sm:$0xff]
        %v293 = vld [vmem:[%s240 + $0x8] sm:$0xff]
        %v294 = vld [vmem:[%s240 + $0x10] sm:$0xff]
        %v295 = vld [vmem:[%s240 + $0x18] sm:$0xff]
        %v296 = vld [vmem:[%s240 + $0x20] sm:$0xff]
        %v297 = vld [vmem:[%s240 + $0x28] sm:$0xff]
        %v298 = vld [vmem:[%s240 + $0x30] sm:$0xff]
        %v299 = vld [vmem:[%s240 + $0x38] sm:$0xff]
        %v300 = vsub.f32 %v292, %v284
        %v301 = vsub.f32 %v293, %v285
        %v302 = vsub.f32 %v294, %v286
        %v303 = vsub.f32 %v295, %v287
        %v304 = vsub.f32 %v296, %v288
        %v305 = vsub.f32 %v297, %v289
        %v306 = vsub.f32 %v298, %v290
        %v307 = vsub.f32 %v299, %v291
        %v308 = vmul.f32 %v300, %v300
        %v309 = vmul.f32 %v301, %v301
        %v310 = vmul.f32 %v302, %v302
        %v311 = vmul.f32 %v303, %v303
        %v312 = vmul.f32 %v304, %v304
        %v313 = vmul.f32 %v305, %v305
        %v314 = vmul.f32 %v306, %v306
        %v315 = vmul.f32 %v307, %v307
        %v316 = vld [vmem:[#allocation2] sm:$0xff]
        %v317 = vld [vmem:[#allocation2 + $0x8] sm:$0xff]
        %v318 = vld [vmem:[#allocation2 + $0x10] sm:$0xff]
        %v319 = vld [vmem:[#allocation2 + $0x18] sm:$0xff]
        %v320 = vld [vmem:[#allocation2 + $0x20] sm:$0xff]
        %v321 = vld [vmem:[#allocation2 + $0x28] sm:$0xff]
        %v322 = vld [vmem:[#allocation2 + $0x30] sm:$0xff]
        %v323 = vld [vmem:[#allocation2 + $0x38] sm:$0xff]
        %v324 = vadd.f32 %v308, 0.0
        %v325 = vadd.f32 %v309, 0.0
        %v326 = vadd.f32 %v310, 0.0
        %v327 = vadd.f32 %v311, 0.0
        %v328 = vadd.f32 %v312, 0.0
        %v329 = vadd.f32 %v313, 0.0
        %v330 = vadd.f32 %v314, 0.0
        %v331 = vadd.f32 %v315, 0.0
        %v332 = vadd.f32 %v316, %v324
        %v333 = vadd.f32 %v317, %v325
        %v334 = vadd.f32 %v318, %v326
        %v335 = vadd.f32 %v319, %v327
        %v336 = vadd.f32 %v320, %v328
        %v337 = vadd.f32 %v321, %v329
        %v338 = vadd.f32 %v322, %v330
        %v339 = vadd.f32 %v323, %v331
        %340 = vst [vmem:[#allocation2] sm:$0xff] %v332
        %341 = vst [vmem:[#allocation2 + $0x8] sm:$0xff] %v333
        %342 = vst [vmem:[#allocation2 + $0x10] sm:$0xff] %v334
        %343 = vst [vmem:[#allocation2 + $0x18] sm:$0xff] %v335
        %344 = vst [vmem:[#allocation2 + $0x20] sm:$0xff] %v336
        %345 = vst [vmem:[#allocation2 + $0x28] sm:$0xff] %v337
        %346 = vst [vmem:[#allocation2 + $0x30] sm:$0xff] %v338
        %347 = vst [vmem:[#allocation2 + $0x38] sm:$0xff] %v339
        // Predicated region
        $region49: #{tpu_custom_call.1} parent=35 // pred_check
          %p348 = pneg %p272
        $region50: #{tpu_custom_call.1} parent=35 // pred_check_branch
          %350 = sbr.rel (%p348) target = $region52
        $region51: #{tpu_custom_call.1} parent=35 // pred_region
          %v351 = vld [vmem:[#allocation2] sm:$0xff]
          %v352 = vld [vmem:[#allocation2 + $0x8] sm:$0xff]
          %v353 = vld [vmem:[#allocation2 + $0x10] sm:$0xff]
          %v354 = vld [vmem:[#allocation2 + $0x18] sm:$0xff]
          %v355 = vld [vmem:[#allocation2 + $0x20] sm:$0xff]
          %v356 = vld [vmem:[#allocation2 + $0x28] sm:$0xff]
          %v357 = vld [vmem:[#allocation2 + $0x30] sm:$0xff]
          %v358 = vld [vmem:[#allocation2 + $0x38] sm:$0xff]
          %v359 = vadd.f32 %v351, %v352
          %v360 = vadd.f32 %v359, %v353
          %v361 = vadd.f32 %v360, %v354
          %v362 = vadd.f32 %v361, %v355
          %v363 = vadd.f32 %v362, %v356
          %v364 = vadd.f32 %v363, %v357
          %v365 = vadd.f32 %v364, %v358
          %366 = vadd.xlane.f32.xlu0 %v365
          %v367 = vpop.xlane.xlu0 %366
          %v368 = vrot.slane %v367, 4
          %v369 = vadd.f32 %v367, %v368
          %v370 = vrot.slane %v369, 2
          %v371 = vadd.f32 %v369, %v370
          %v372 = vrot.slane %v371, 1
          %v373 = vadd.f32 %v371, %v372
          %s374 = vtos %v373
          %v375 = vld [vmem:[%s2] sm:$0x3]
          %v376 = vld [vmem:[%s3] sm:$0x3]
          %v377 = vadd.f32 %v376, 1.0
          %v378 = vmul.f32 %v375, %v375
          %v379 = vsub.f32 %v377, %v378
          %v380 = vmul.f32 %v376, 1.442695
          %v381 = vpow.pop %v380
          %v382 = vsub.f32 %v379, %v381
          %vm383 = vcmask 254976
          %v384 = vsel %vm383, %v382, 0.0
          %385 = vadd.xlane.f32.xlu0 %v384
          %v386 = vpop.xlane.xlu0 %385
          %v387 = vrot.slane %v386, 4
          %v388 = vadd.f32 %v386, %v387
          %v389 = vrot.slane %v388, 2
          %v390 = vadd.f32 %v388, %v389
          %v391 = vrot.slane %v390, 1
          %v392 = vadd.f32 %v390, %v391
          %s393 = vtos %v392
          %s394 = smul.f32 %s393, -0.5
          %p395 = scmp.eq.s32.totalorder %s28, 0
          %s396 = scalar_select %p395, 1, 0
          %s397 = scvt.s32.f32 %s396
          %s398 = smul.f32 %s397, %s394
          %s399 = sadd.f32 %s374, %s398
          %v400 = vstv %s399
          %401 = vst [vmem:[%s269] sm:$0xff] %v400
        $region52: #{tpu_custom_call.1} parent=35 // pred_fallthru
          _
        %s402 = sand.u32 %s142, 1
        %s403 = scalar_lea.sflag [#allocation5], %s402
        %s404 = sand.u32 %s142, 1
        %s405 = smul.addr %s404, 8
        %s406 = scalar_lea.vmem [#allocation8], %s405
        // Predicated region
        $region53: #{tpu_custom_call.1} parent=35 // pred_check
          %p407 = pneg %p152
        $region54: #{tpu_custom_call.1} parent=35 // pred_check_branch
          %409 = sbr.rel (%p407) target = $region56
        $region55: #{tpu_custom_call.1} parent=35 // pred_region
          %s411 = ssub.s32 128, 128
          %412 = vsyncadd %s403, %s411
          %s413 = smul.addr %s28, 128
          %s414 = scalar_lea.hbm %s4, %s413
          %s416 = sshll.u32 %s406, 4
          %s417 = int_to_ptr.vmem [resolvable:$true] %s416
          %419 = dma.vmem_to_hbm [thread:$0]  %s417, 128, %s414, %s403
        $region56: #{tpu_custom_call.1} parent=35 // pred_fallthru
          _
      $region36: #{tpu_custom_call.1} parent=5 // pred_fallthru
        _
      %p420 = scmp.le.s32.totalorder 2, %s19
      // Predicated region
      $region57: #{tpu_custom_call.1} parent=5 // pred_check
        %p421 = pneg %p420
      $region58: #{tpu_custom_call.1} parent=5 // pred_check_branch
        %423 = sbr.rel (%p421) target = $region60
      $region59: #{tpu_custom_call.1} parent=5 // pred_region
        %s424 = ssub.s32 %s19, 2
        // Predicated region
        $region61: #{tpu_custom_call.1} parent=59 // pred_check
          %p425 = pneg %p158
        $region62: #{tpu_custom_call.1} parent=59 // pred_check_branch
          %427 = sbr.rel (%p425) target = $region64
        $region63: #{tpu_custom_call.1} parent=59 // pred_region
          %s428 = sand.u32 %s143, 1
          %s429 = scalar_lea.sflag [#allocation5], %s428
          %s430 = sand.u32 %s143, 1
          %s431 = smul.addr %s430, 8
          %s432 = scalar_lea.vmem [#allocation8], %s431
          %433 = dma.done %s429, 128
        $region64: #{tpu_custom_call.1} parent=59 // pred_fallthru
          _
      $region60: #{tpu_custom_call.1} parent=5 // pred_fallthru
        _
    $region6: #{tpu_custom_call.1} parent=1 // loop_footer
      %s23 = sadd.s32 1, %s19
    $region7: #{tpu_custom_call.1} parent=1 // loop_footer_branch
      %18 = sbr.rel target = $region3
    $region8: #{tpu_custom_call.1} parent=1 // loop_exit
      _
    %434 = vsyncpa [#allocation4], 1
    %s435 = scalar_lea.sflag [#allocation4], 1
    %436 = vsyncpa %s435, 1
    %437 = vsyncpa [#allocation7], 1
    %s438 = scalar_lea.sflag [#allocation7], 1
    %439 = vsyncpa %s438, 1
    %440 = vsyncpa [#allocation5], 1
    %s441 = scalar_lea.sflag [#allocation5], 1
    %442 = vsyncpa %s441, 1

</llo_original>
